<compile_context>
chip_gen: v6e
topology: v6e:2x2x1
jax: 0.10.0
libtpu: 0.0.40
codegen_flags: <defaults>
</compile_context>

<pallas_src>
import jax
import jax.numpy as jnp
from jax.experimental import pallas as pl
from jax.experimental.pallas import tpu as pltpu


def _scale_rows_kernel(gf_ref, scale_ref, o_ref):
    # gf_ref:    (TM, TN)  tile of the flattened (B*C, H*W) feature map
    # scale_ref: (TM, 1)   per-row (= per batch*channel) attention scale
    # o_ref:     (TM, TN)
    scale = scale_ref[...].astype(gf_ref.dtype)          # tiny (TM,1) cast only
    o_ref[...] = (gf_ref[...] * scale).astype(o_ref.dtype)


def _pick_tile(extent, align, candidates):
    """Largest candidate tile (multiple of `align`) that evenly divides `extent`.

    Falls back to the full extent when `extent` is not `align`-aligned (legal via
    the "block dim == full array dim" exception)."""
    if extent % align != 0:
        return extent
    for c in candidates:
        if c <= extent and extent % c == 0:
            return c
    return align


def channel_atten(global_features, instance_params, weight, bias):
    """
    global_features: (B, C, H, W)   float32
    instance_params: (B, Cin)       float32
    weight:          (C, Cin)       (PyTorch nn.Linear convention)
    bias:            (C,)
    returns:         (B, C, H, W)
    """
    B, C, H, W = global_features.shape
    HW = H * W
    rows = B * C

    # --- Hoisted Linear: one small matmul, runs as a regular XLA op. ---------
    atten = jnp.dot(instance_params, weight.T,
                    preferred_element_type=jnp.float32) + bias      # (B, C)
    scale = atten.reshape(rows, 1).astype(jnp.float32)               # (B*C, 1)

    # --- 2-D view of the feature map: rows -> sublanes, HW -> lanes. --------
    gf2 = global_features.reshape(rows, HW)

    # Tile sizes: 8-aligned rows, 128-aligned lanes, <= ~2 MiB f32 per block.
    tn = _pick_tile(HW, 128, (2048, 1024, 512, 256, 128))
    max_tm = max(8, (2 * 1024 * 1024 // 4) // max(tn, 1))            # ~2 MiB cap
    tm_candidates = tuple(t for t in (512, 256, 128, 64, 32, 16, 8) if t <= max_tm)
    tm = _pick_tile(rows, 8, tm_candidates if tm_candidates else (8,))

    grid = (pl.cdiv(rows, tm), pl.cdiv(HW, tn))

    itemsize = jnp.dtype(global_features.dtype).itemsize
    cost = pl.CostEstimate(
        flops=rows * HW,                                   # one mul per element
        transcendentals=0,
        bytes_accessed=2 * rows * HW * itemsize + rows * 4)

    out2 = pl.pallas_call(
        _scale_rows_kernel,
        out_shape=jax.ShapeDtypeStruct((rows, HW), global_features.dtype),
        grid_spec=pltpu.PrefetchScalarGridSpec(
            num_scalar_prefetch=0,
            grid=grid,
            in_specs=[
                # TODO(synk): if DMA is still exposed for tiny HW, bump this
                # spec to pipeline_mode=pl.Buffered(3).
                pl.BlockSpec((tm, tn), lambda i, j: (i, j)),   # feature tile
                pl.BlockSpec((tm, 1), lambda i, j: (i, 0)),    # per-row scale
            ],
            out_specs=pl.BlockSpec((tm, tn), lambda i, j: (i, j)),
        ),
        compiler_params=pltpu.CompilerParams(
            dimension_semantics=("parallel", "parallel"),
            vmem_limit_bytes=32 * 1024 * 1024),
        cost_estimate=cost,
    )(gf2, scale)

    return out2.reshape(B, C, H, W)


if __name__ == "__main__":
    # Small shapes consistent with the module's forward.
    B, C, H, W = 2, 4, 16, 16     # global_features: NCHW, C == out_channels
    Cin = 8                       # in_channels of the Linear

    key = jax.random.PRNGKey(0)
    k1, k2, k3, k4 = jax.random.split(key, 4)

    global_features = jax.random.normal(k1, (B, C, H, W), dtype=jnp.float32)
    instance_params = jax.random.normal(k2, (B, Cin), dtype=jnp.float32)

    # Deterministic synthetic nn.Linear(in_channels=Cin, out_channels=C) params.
    weight = jax.random.normal(k3, (C, Cin), dtype=jnp.float32) * 0.1
    bias = jax.random.normal(k4, (C,), dtype=jnp.float32) * 0.1

    out = channel_atten(global_features, instance_params, weight, bias)
    out = jax.block_until_ready(out)

    # Pure-JAX reference for correctness.
    atten_ref = instance_params @ weight.T + bias                 # (B, C)
    ref = global_features * atten_ref.reshape(B, C, 1, 1)
    assert out.shape == (B, C, H, W)
    assert jnp.allclose(out, ref, atol=1e-5, rtol=1e-5)

    print("KERNEL_OK")
</pallas_src>

<mosaic_0001>
module attributes {stable_mosaic.version = 11 : i64} {
  func.func @_scale_rows_kernel(%arg0: i32, %arg1: i32, %arg2: memref<8x256xf32, #tpu.memory_space<vmem>>, %arg3: memref<8x1xf32, #tpu.memory_space<vmem>>, %arg4: memref<8x256xf32, #tpu.memory_space<vmem>>) attributes {dimension_semantics = [#tpu.dimension_semantics<parallel>, #tpu.dimension_semantics<parallel>], iteration_bounds = array<i64: 1, 1>, scalar_prefetch = 0 : i64, scratch_operands = 0 : i64, tpu.core_type = #tpu.core_type<tc>, window_params = [{transform_indices = @transform_0, window_bounds = array<i64: 8, 256>}, {transform_indices = @transform_1, window_bounds = array<i64: 8, 1>}, {transform_indices = @transform_2, window_bounds = array<i64: 8, 256>}]} {
    %c0 = arith.constant 0 : index
    %c0_0 = arith.constant 0 : index
    %0 = vector.load %arg3[%c0, %c0_0] : memref<8x1xf32, #tpu.memory_space<vmem>>, vector<8x1xf32>
    %c0_1 = arith.constant 0 : index
    %c0_2 = arith.constant 0 : index
    %1 = vector.load %arg2[%c0_1, %c0_2] : memref<8x256xf32, #tpu.memory_space<vmem>>, vector<8x256xf32>
    %2 = vector.broadcast %0 : vector<8x1xf32> to vector<8x256xf32>
    %3 = arith.mulf %1, %2 : vector<8x256xf32>
    %c0_3 = arith.constant 0 : index
    %c0_4 = arith.constant 0 : index
    %4 = vector.load %arg4[%c0_3, %c0_4] : memref<8x256xf32, #tpu.memory_space<vmem>>, vector<8x256xf32>
    tpu.vector_store %arg4[%c0_3, %c0_4], %3 {strides = array<i32>} : memref<8x256xf32, #tpu.memory_space<vmem>>, vector<8x256xf32>,
    return
  }
  func.func @transform_0(%arg0: i32, %arg1: i32) -> (i32, i32) {
    %c0_i32 = arith.constant 0 : i32
    return %arg0, %arg1 : i32, i32
  }
  func.func @transform_1(%arg0: i32, %arg1: i32) -> (i32, i32) {
    %c0_i32 = arith.constant 0 : i32
    %c0_i32_0 = arith.constant 0 : i32
    return %arg0, %c0_i32 : i32, i32
  }
  func.func @transform_2(%arg0: i32, %arg1: i32) -> (i32, i32) {
    %c0_i32 = arith.constant 0 : i32
    return %arg0, %arg1 : i32, i32
  }
}

</mosaic_0001>

<llo_original>
// kernel: tpu_custom_call.1
$region0: #{tpu_custom_call.1}
  #allocation0 [shape = 'u32[]', space=smem, size = 0x4, offset = 0x4, fixed_abs, tag = 'smem constant byte address 0x4 - core index']
  #allocation1 [shape = 'u32[144,128]{1,0:T(1,128)}', space=vmem, size = 0x12000, scoped, tag = 'internal scratch']
  %s0 = inlined_call_operand.hbm [shape: f32[8,256], index: 0, kind: input, shape index: {}]
  %s1 = inlined_call_operand.vmem [shape: f32[8,1], index: 1, kind: input, shape index: {}]
  %s2 = inlined_call_operand.hbm [shape: f32[8,256], index: 2, kind: output, shape index: {}]
  %s3 = sld [smem:[#allocation0]]
  $region22: #{tpu_custom_call.1} parent=0
    _
  %s5 = ssub.s32 1, %s3
  %s6 = scalar_select 0, %s5, %s3
  $region1: #{tpu_custom_call.1} parent=0
    #allocation2 [shape = 'u8[8192]{0}', space=vmem, size = 0x2000, scoped, tag = 'input window, operand 0, single buffered']
    #allocation3 [shape = 's32[1]{0}', space=sflag, size = 0x4, scoped, tag = 'scoped memory for tpu_custom_call.1']
    #allocation4 [shape = 's32[1]{0}', space=sflag, size = 0x4, scoped, tag = 'scoped memory for tpu_custom_call.1']
    #allocation5 [shape = 'u8[8192]{0}', space=vmem, size = 0x2000, scoped, tag = 'output window, operand 0, single buffered']
    %7 = vsyncpa [#allocation3], 0
    %8 = vsyncpa [#allocation4], 0
    // Predicated region
    $region2: #{tpu_custom_call.1} parent=1 // pred_check
      _
    $region3: #{tpu_custom_call.1} parent=1 // pred_check_branch
      %10 = sbr.rel (0) target = $region5
    $region4: #{tpu_custom_call.1} parent=1 // pred_region
      %s12 = ssub.s32 256, 256
      %13 = vsyncadd [#allocation3], %s12
      %s15 = sshll.u32 [#allocation2], 4
      %s16 = int_to_ptr.vmem [resolvable:$true] %s15
      %18 = dma.hbm_to_vmem [thread:$0]  %s0, 256, %s16, [#allocation3]
    $region5: #{tpu_custom_call.1} parent=1 // pred_fallthru
      _
    // Predicated region
    $region6: #{tpu_custom_call.1} parent=1 // pred_check
      _
    $region7: #{tpu_custom_call.1} parent=1 // pred_check_branch
      %20 = sbr.rel (0) target = $region9
    $region8: #{tpu_custom_call.1} parent=1 // pred_region
      _
    $region9: #{tpu_custom_call.1} parent=1 // pred_fallthru
      _
    // Predicated region
    $region10: #{tpu_custom_call.1} parent=1 // pred_check
      _
    $region11: #{tpu_custom_call.1} parent=1 // pred_check_branch
      %22 = sbr.rel (0) target = $region13
    $region12: #{tpu_custom_call.1} parent=1 // pred_region
      %23 = dma.done [#allocation3], 256
    $region13: #{tpu_custom_call.1} parent=1 // pred_fallthru
      _
    %v24 = vld [vmem:[%s1] sm:$0xff]
    %v25 = vld [vmem:[#allocation2] sm:$0xff]
    %v26 = vld [vmem:[#allocation2 + $0x8] sm:$0xff]
    %28 = vset.pattern.permute.xlu0 0
    %29 = vperm.xlu0 %28, %v24
    %v30 = vpop.permute.xlu0 %29
    %v32 = vmul.f32 %v25, %v30
    %v33 = vmul.f32 %v26, %v30
    %34 = vst [vmem:[#allocation5] sm:$0xff] %v32
    %35 = vst [vmem:[#allocation5 + $0x8] sm:$0xff] %v33
    // Predicated region
    $region14: #{tpu_custom_call.1} parent=1 // pred_check
      _
    $region15: #{tpu_custom_call.1} parent=1 // pred_check_branch
      %37 = sbr.rel (0) target = $region17
    $region16: #{tpu_custom_call.1} parent=1 // pred_region
      %s39 = ssub.s32 256, 256
      %40 = vsyncadd [#allocation4], %s39
      %s42 = sshll.u32 [#allocation5], 4
      %s43 = int_to_ptr.vmem [resolvable:$true] %s42
      %45 = dma.vmem_to_hbm [thread:$0]  %s43, 256, %s2, [#allocation4]
    $region17: #{tpu_custom_call.1} parent=1 // pred_fallthru
      _
    // Predicated region
    $region18: #{tpu_custom_call.1} parent=1 // pred_check
      _
    $region19: #{tpu_custom_call.1} parent=1 // pred_check_branch
      %47 = sbr.rel (0) target = $region21
    $region20: #{tpu_custom_call.1} parent=1 // pred_region
      %48 = dma.done [#allocation4], 256
    $region21: #{tpu_custom_call.1} parent=1 // pred_fallthru
      _
    %49 = vsyncpa [#allocation3], 1
    %50 = vsyncpa [#allocation4], 1

</llo_original>
